<compile_context>
chip_gen: v7x
topology: tpu7x:2x2x1
jax: 0.10.0
libtpu: 0.0.40
codegen_flags: <defaults>
</compile_context>

<pallas_src>
import jax
import jax.numpy as jnp
from jax import lax
from jax.experimental import pallas as pl
from jax.experimental.pallas import tpu as pltpu

HIDDEN = 768                 # fixed by the PyTorch module (seq_length * 768)
COMPUTE_DTYPE = jnp.bfloat16  # storage/DMA dtype for x and w3 (f32 accumulate)


# ---------------------------------------------------------------------------
# Pallas kernel: one K-tile of  out = x @ w3.T + b3
#   x_ref : [B, tk]  bf16   (K-tile of the flattened hidden state)
#   w_ref : [NO, tk] bf16   (K-tile of the weight, PyTorch [out, in] layout)
#   b_ref : [1, NO]  f32
#   out_ref: [B, NO] f32    (same block across the whole reduction axis)
#   acc_ref: [B, NO] f32 VMEM scratch accumulator
# ---------------------------------------------------------------------------
def head_kernel(x_ref, w_ref, b_ref, out_ref, acc_ref):
    k = pl.program_id(0)

    @pl.when(k == 0)
    def _():
        acc_ref[...] = jnp.zeros_like(acc_ref)

    # Contract the last axis of x with the last axis of w (i.e. x @ w.T)
    # without ever materializing a transpose of the big weight.
    acc_ref[...] += lax.dot_general(
        x_ref[...], w_ref[...],
        dimension_numbers=(((1,), (1,)), ((), ())),
        preferred_element_type=jnp.float32)

    @pl.when(k == pl.num_programs(0) - 1)
    def _():
        out_ref[...] = (acc_ref[...] + b_ref[...]).astype(out_ref.dtype)


def _pick_tile_k(K, target=4096):
    """Largest multiple of 128 that divides K and is <= target (falls back to K)."""
    best = K
    t = 128
    limit = min(K, target)
    while t <= limit:
        if K % t == 0:
            best = t
        t += 128
    return best


def linear_head(x_flat, w3, b3):
    """x_flat: [B, K] (K = S*768). w3: [NO, K] (PyTorch Linear layout). b3: [NO].
    Returns out [B, NO] f32 = x_flat @ w3.T + b3."""
    B, K = x_flat.shape
    NO = w3.shape[0]
    assert w3.shape == (NO, K) and b3.shape == (NO,)

    tk = _pick_tile_k(K)
    nk = K // tk

    x_c = x_flat.astype(COMPUTE_DTYPE)
    w_c = w3.astype(COMPUTE_DTYPE)        # no-op if params already stored as bf16
    b_r = b3.reshape(1, NO).astype(jnp.float32)

    itemsize = jnp.dtype(COMPUTE_DTYPE).itemsize
    # double-buffered input tiles + (tiny) output/bias/accumulator
    need = 2 * (B + NO) * tk * itemsize + 2 * B * NO * 4 + 2 * NO * 4 + B * NO * 4
    vmem_limit = int(min(max(2 * need, 8 << 20), 48 << 20))

    cost = pl.CostEstimate(
        flops=2 * B * K * NO,
        transcendentals=0,
        bytes_accessed=(B * K + NO * K) * itemsize + NO * 4 + B * NO * 4,
    )

    out = pl.pallas_call(
        head_kernel,
        out_shape=jax.ShapeDtypeStruct((B, NO), jnp.float32),
        grid_spec=pltpu.PrefetchScalarGridSpec(
            num_scalar_prefetch=0,
            grid=(nk,),
            in_specs=[
                pl.BlockSpec((B, tk), lambda k: (0, k)),    # x K-tile
                pl.BlockSpec((NO, tk), lambda k: (0, k)),   # w K-tile (lane-dense)
                pl.BlockSpec((1, NO), lambda k: (0, 0)),    # bias (constant)
            ],
            out_specs=pl.BlockSpec((B, NO), lambda k: (0, 0)),
            scratch_shapes=[pltpu.VMEM((B, NO), jnp.float32)],
        ),
        compiler_params=pltpu.CompilerParams(
            dimension_semantics=("arbitrary",),
            vmem_limit_bytes=vmem_limit),
        cost_estimate=cost,
    )(x_c, w_c, b_r)
    return out


# ---------------------------------------------------------------------------
# Full forward pass (glue in plain JAX, hot path in the Pallas kernel above).
# ---------------------------------------------------------------------------
def forward(params, data, targets=None):
    input_ids = data["input_ids"]            # [B, 1, S] int32
    attention_mask = data["attention_mask"]  # [B, 1, S] int32

    ids = jnp.squeeze(input_ids, axis=1)                              # [B, S]
    mask = jnp.squeeze(attention_mask, axis=1).astype(jnp.float32)    # [B, S]

    # l1 surrogate: deterministic masked embedding lookup -> [B, S, 768]
    # TODO(synk): real pretrained AutoModel not reproducible in-script.
    last_hidden_state = jnp.take(params["emb"], ids, axis=0) * mask[..., None]

    B, S, H = last_hidden_state.shape
    # l2: Dropout(0.3) — identity in eval mode.
    # TODO(synk): training-mode dropout mask / PRNG path not implemented.
    x_flat = last_hidden_state.reshape(B, S * H)                      # [B, S*768]

    # l3: Linear(S*768 -> num_outputs), fused Pallas kernel.
    out = linear_head(x_flat, params["w3"], params["b3"])

    loss = None
    if targets is not None:
        diff = out.astype(jnp.float32) - targets.astype(jnp.float32)
        loss = jnp.mean(diff * diff)          # nn.MSELoss(reduction='mean')
    return out, loss


# ---------------------------------------------------------------------------
# Deterministic parameter init (w3 stored in bf16 so no per-call cast/DMA).
# ---------------------------------------------------------------------------
def init_params(key, seq_length, num_outputs, vocab_size=64):
    k_emb, k_w3, k_b3 = jax.random.split(key, 3)
    in3 = seq_length * HIDDEN
    w3 = jax.random.uniform(k_w3, (num_outputs, in3), jnp.float32,
                            -1.0, 1.0) / jnp.sqrt(in3)
    b3 = jax.random.uniform(k_b3, (num_outputs,), jnp.float32,
                            -1.0, 1.0) / jnp.sqrt(in3)
    return {
        "emb": jax.random.normal(k_emb, (vocab_size, HIDDEN), jnp.float32) * 0.02,
        # PyTorch nn.Linear layout: weight [out, in] — kept untransposed.
        "w3": w3.astype(COMPUTE_DTYPE),
        "b3": b3,
    }


if __name__ == "__main__":
    B = 2          # batch
    S = 8          # seq_length
    NUM_OUT = 3    # num_outputs
    VOCAB = 64

    key = jax.random.PRNGKey(0)
    k_params, k_ids, k_tgt = jax.random.split(key, 3)

    params = init_params(k_params, S, NUM_OUT, VOCAB)

    data = {
        "input_ids": jax.random.randint(k_ids, (B, 1, S), 0, VOCAB, jnp.int32),
        "attention_mask": jnp.ones((B, 1, S), jnp.int32),
    }
    targets = jax.random.normal(k_tgt, (B, NUM_OUT), jnp.float32)

    out, loss = jax.jit(forward)(params, data, targets)
    jax.block_until_ready((out, loss))

    # Pure-JAX reference of the Pallas head (same bf16 inputs, f32 accumulate).
    ids = jnp.squeeze(data["input_ids"], 1)
    mask = jnp.squeeze(data["attention_mask"], 1).astype(jnp.float32)
    hs = jnp.take(params["emb"], ids, axis=0) * mask[..., None]
    x_ref = hs.reshape(B, S * HIDDEN).astype(COMPUTE_DTYPE).astype(jnp.float32)
    w_ref = params["w3"].astype(jnp.float32)
    out_ref = x_ref @ w_ref.T + params["b3"]

    assert out.shape == (B, NUM_OUT)
    assert loss.shape == ()
    assert bool(jnp.isfinite(loss))
    assert jnp.allclose(out, out_ref, rtol=1e-2, atol=1e-2)
    print("KERNEL_OK")
</pallas_src>

<mosaic_0001>
module attributes {stable_mosaic.version = 11 : i64} {
  func.func @head_kernel(%arg0: i32, %arg1: memref<2x3072xbf16, #tpu.memory_space<vmem>>, %arg2: memref<3x3072xbf16, #tpu.memory_space<vmem>>, %arg3: memref<1x3xf32, #tpu.memory_space<vmem>>, %arg4: memref<2x3xf32, #tpu.memory_space<vmem>>, %arg5: memref<2x3xf32, #tpu.memory_space<vmem>>) attributes {dimension_semantics = [#tpu.dimension_semantics<arbitrary>], iteration_bounds = array<i64: 2>, scalar_prefetch = 0 : i64, scratch_operands = 1 : i64, tpu.core_type = #tpu.core_type<tc>, window_params = [{transform_indices = @transform_0, window_bounds = array<i64: 2, 3072>}, {transform_indices = @transform_1, window_bounds = array<i64: 3, 3072>}, {pipeline_mode = #tpu.pipeline_mode<synchronous>, transform_indices = @transform_2, window_bounds = array<i64: 1, 3>}, {pipeline_mode = #tpu.pipeline_mode<synchronous>, transform_indices = @transform_3, window_bounds = array<i64: 2, 3>}]} {
    %c0_i32 = arith.constant 0 : i32
    %0 = arith.cmpi eq, %arg0, %c0_i32 : i32
    %1 = arith.extui %0 : i1 to i32
    %c0_i32_0 = arith.constant 0 : i32
    %2 = arith.cmpi ne, %1, %c0_i32_0 : i32
    scf.if %2 {
      %cst_9 = arith.constant 0.000000e+00 : f32
      %12 = vector.broadcast %cst_9 : f32 to vector<2x3xf32>
      %c0_10 = arith.constant 0 : index
      %c0_11 = arith.constant 0 : index
      %13 = vector.load %arg5[%c0_10, %c0_11] : memref<2x3xf32, #tpu.memory_space<vmem>>, vector<2x3xf32>
      tpu.vector_store %arg5[%c0_10, %c0_11], %12 {strides = array<i32>} : memref<2x3xf32, #tpu.memory_space<vmem>>, vector<2x3xf32>,
    } else {
    }
    %c0 = arith.constant 0 : index
    %c0_1 = arith.constant 0 : index
    %3 = vector.load %arg5[%c0, %c0_1] : memref<2x3xf32, #tpu.memory_space<vmem>>, vector<2x3xf32>
    %c0_2 = arith.constant 0 : index
    %c0_3 = arith.constant 0 : index
    %4 = vector.load %arg1[%c0_2, %c0_3] : memref<2x3072xbf16, #tpu.memory_space<vmem>>, vector<2x3072xbf16>
    %c0_4 = arith.constant 0 : index
    %c0_5 = arith.constant 0 : index
    %5 = vector.load %arg2[%c0_4, %c0_5] : memref<3x3072xbf16, #tpu.memory_space<vmem>>, vector<3x3072xbf16>
    %cst = arith.constant dense<0.000000e+00> : vector<2x3xf32>
    %6 = tpu.matmul %4, %5, %cst {dimension_numbers = #tpu.dot_dimension_numbers<[1], [1], [0], [0], [0, 0, 1, 0], [], []>} : vector<2x3072xbf16>, vector<3x3072xbf16>, vector<2x3xf32> -> vector<2x3xf32>
    %7 = arith.addf %3, %6 : vector<2x3xf32>
    %c0_6 = arith.constant 0 : index
    %c0_7 = arith.constant 0 : index
    %8 = vector.load %arg5[%c0_6, %c0_7] : memref<2x3xf32, #tpu.memory_space<vmem>>, vector<2x3xf32>
    tpu.vector_store %arg5[%c0_6, %c0_7], %7 {strides = array<i32>} : memref<2x3xf32, #tpu.memory_space<vmem>>, vector<2x3xf32>,
    %c1_i32 = arith.constant 1 : i32
    %9 = arith.cmpi eq, %arg0, %c1_i32 : i32
    %10 = arith.extui %9 : i1 to i32
    %c0_i32_8 = arith.constant 0 : i32
    %11 = arith.cmpi ne, %10, %c0_i32_8 : i32
    scf.if %11 {
      %c0_9 = arith.constant 0 : index
      %c0_10 = arith.constant 0 : index
      %12 = vector.load %arg5[%c0_9, %c0_10] : memref<2x3xf32, #tpu.memory_space<vmem>>, vector<2x3xf32>
      %c0_11 = arith.constant 0 : index
      %c0_12 = arith.constant 0 : index
      %13 = vector.load %arg3[%c0_11, %c0_12] : memref<1x3xf32, #tpu.memory_space<vmem>>, vector<1x3xf32>
      %14 = vector.broadcast %13 : vector<1x3xf32> to vector<2x3xf32>
      %15 = arith.addf %12, %14 : vector<2x3xf32>
      %c0_13 = arith.constant 0 : index
      %c0_14 = arith.constant 0 : index
      %16 = vector.load %arg4[%c0_13, %c0_14] : memref<2x3xf32, #tpu.memory_space<vmem>>, vector<2x3xf32>
      tpu.vector_store %arg4[%c0_13, %c0_14], %15 {strides = array<i32>} : memref<2x3xf32, #tpu.memory_space<vmem>>, vector<2x3xf32>,
    } else {
    }
    return
  }
  func.func @transform_0(%arg0: i32) -> (i32, i32) {
    %c0_i32 = arith.constant 0 : i32
    %c0_i32_0 = arith.constant 0 : i32
    return %c0_i32, %arg0 : i32, i32
  }
  func.func @transform_1(%arg0: i32) -> (i32, i32) {
    %c0_i32 = arith.constant 0 : i32
    %c0_i32_0 = arith.constant 0 : i32
    return %c0_i32, %arg0 : i32, i32
  }
  func.func @transform_2(%arg0: i32) -> (i32, i32) {
    %c0_i32 = arith.constant 0 : i32
    %c0_i32_0 = arith.constant 0 : i32
    %c0_i32_1 = arith.constant 0 : i32
    return %c0_i32, %c0_i32_0 : i32, i32
  }
  func.func @transform_3(%arg0: i32) -> (i32, i32) {
    %c0_i32 = arith.constant 0 : i32
    %c0_i32_0 = arith.constant 0 : i32
    %c0_i32_1 = arith.constant 0 : i32
    return %c0_i32, %c0_i32_0 : i32, i32
  }
}

</mosaic_0001>

<llo_original>
// kernel: forward.1
$region0: #{forward.1}
  #allocation0 [shape = 'u32[]', space=smem, size = 0x4, offset = 0x4, fixed_abs, tag = 'smem constant byte address 0x4 - core index']
  #allocation1 [shape = 'u32[144,128]{1,0:T(1,128)}', space=vmem, size = 0x12000, scoped, tag = 'internal scratch']
  #allocation2 [shape = 'f32[2,3]{1,0:T(2,128)}', space=vmem, size = 0x400, scoped, tag = 'scratch operand']
  %s0 = inlined_call_operand.vmem [shape: bf16[2,6144], index: 0, kind: input, shape index: {}]
  %s1 = inlined_call_operand.vmem [shape: bf16[3,6144], index: 1, kind: input, shape index: {}]
  %s2 = inlined_call_operand.vmem [shape: f32[1,3], index: 2, kind: input, shape index: {}]
  %s3 = inlined_call_operand.vmem [shape: f32[2,3], index: 3, kind: output, shape index: {}]
  %s4 = sld [smem:[#allocation0]]
  $region53: #{forward.1} parent=0
    _
  %s6 = ssub.s32 1, %s4
  %s7 = scalar_select 0, %s6, %s4
  loop: start=0, step=1, limit=4
  $region2: #{forward.1} parent=0 // loop_pre_header
    _
  $region3: #{forward.1} parent=0 // loop_header
    %s9 = sphi 0, %s13
    %p10 = scmp.ge.s32.totalorder %s9, 4
    %s19 = sphi 0, %s21
    %s22 = sphi 0, %s19
    %s23 = sphi 0, %s22
    %s39 = sphi 0, %s23
    %s45 = sphi 0, %s47
    %s48 = sphi 0, %s45
    %s49 = sphi 0, %s48
    %s65 = sphi 0, %s49
    %s69 = sphi 0, %s69
    %s71 = sphi 0, %s69
    %s72 = sphi 0, %s71
    %s86 = sphi 0, %s72
    %s90 = sphi 0, %s90
    %s92 = sphi 0, %s90
    %s93 = sphi 0, %s92
    %s107 = sphi 0, %s93
  $region4: #{forward.1} parent=0 // loop_header_branch
    %12 = sbr.rel (%p10) target = $region8
  $region5: #{forward.1} parent=0 // loop_body
    %s14 = ssub.s32 %s9, 1
    %s15 = ssub.s32 %s9, 2
    %s16 = sadd.s32 %s9, 1
    %s17 = ssub.s32 %s9, %s16
    %p18 = scmp.eq.s32.totalorder %s17, 0
    %s20 = sadd.s32 %s19, 1
    %s21 = scalar_select %p18, %s19, %s20
    %p24 = pneg %p18
    %p25 = scmp.eq.s32.totalorder %s9, 1
    %p26 = por %p24, %p25
    %p27 = scmp.ne.s32.totalorder %s19, %s22
    %p28 = scmp.eq.s32.totalorder %s9, 0
    %p29 = por %p27, %p28
    %p30 = scmp.ne.s32.totalorder %s19, %s22
    %p31 = scmp.eq.s32.totalorder %s14, 1
    %p32 = por %p30, %p31
    %p33 = scmp.ne.s32.totalorder %s22, %s23
    %p34 = scmp.eq.s32.totalorder %s14, 0
    %p35 = por %p33, %p34
    %p36 = scmp.ne.s32.totalorder %s22, %s23
    %p37 = scmp.eq.s32.totalorder %s15, 1
    %p38 = por %p36, %p37
    %p40 = scmp.ne.s32.totalorder %s23, %s39
    %p41 = scmp.eq.s32.totalorder %s15, 0
    %p42 = por %p40, %p41
    %s43 = ssub.s32 %s9, %s16
    %p44 = scmp.eq.s32.totalorder %s43, 0
    %s46 = sadd.s32 %s45, 1
    %s47 = scalar_select %p44, %s45, %s46
    %p50 = pneg %p44
    %p51 = scmp.eq.s32.totalorder %s9, 1
    %p52 = por %p50, %p51
    %p53 = scmp.ne.s32.totalorder %s45, %s48
    %p54 = scmp.eq.s32.totalorder %s9, 0
    %p55 = por %p53, %p54
    %p56 = scmp.ne.s32.totalorder %s45, %s48
    %p57 = scmp.eq.s32.totalorder %s14, 1
    %p58 = por %p56, %p57
    %p59 = scmp.ne.s32.totalorder %s48, %s49
    %p60 = scmp.eq.s32.totalorder %s14, 0
    %p61 = por %p59, %p60
    %p62 = scmp.ne.s32.totalorder %s48, %s49
    %p63 = scmp.eq.s32.totalorder %s15, 1
    %p64 = por %p62, %p63
    %p66 = scmp.ne.s32.totalorder %s49, %s65
    %p67 = scmp.eq.s32.totalorder %s15, 0
    %p68 = por %p66, %p67
    %s70 = sadd.s32 %s69, 1
    %p73 = scmp.eq.s32.totalorder %s9, 1
    %p74 = scmp.ne.s32.totalorder %s69, %s71
    %p75 = scmp.eq.s32.totalorder %s9, 0
    %p76 = por %p74, %p75
    %p77 = scmp.ne.s32.totalorder %s69, %s71
    %p78 = scmp.eq.s32.totalorder %s14, 1
    %p79 = por %p77, %p78
    %p80 = scmp.ne.s32.totalorder %s71, %s72
    %p81 = scmp.eq.s32.totalorder %s14, 0
    %p82 = por %p80, %p81
    %p83 = scmp.ne.s32.totalorder %s71, %s72
    %p84 = scmp.eq.s32.totalorder %s15, 1
    %p85 = por %p83, %p84
    %p87 = scmp.ne.s32.totalorder %s72, %s86
    %p88 = scmp.eq.s32.totalorder %s15, 0
    %p89 = por %p87, %p88
    %s91 = sadd.s32 %s90, 1
    %p94 = scmp.eq.s32.totalorder %s9, 1
    %p95 = scmp.ne.s32.totalorder %s90, %s92
    %p96 = scmp.eq.s32.totalorder %s9, 0
    %p97 = por %p95, %p96
    %p98 = scmp.ne.s32.totalorder %s90, %s92
    %p99 = scmp.eq.s32.totalorder %s14, 1
    %p100 = por %p98, %p99
    %p101 = scmp.ne.s32.totalorder %s92, %s93
    %p102 = scmp.eq.s32.totalorder %s14, 0
    %p103 = por %p101, %p102
    %p104 = scmp.ne.s32.totalorder %s92, %s93
    %p105 = scmp.eq.s32.totalorder %s15, 1
    %p106 = por %p104, %p105
    %p108 = scmp.ne.s32.totalorder %s93, %s107
    %p109 = scmp.eq.s32.totalorder %s15, 0
    %p110 = por %p108, %p109
    %p111 = scmp.le.s32.totalorder 1, %s9
    %p112 = scmp.lt.s32.totalorder %s9, 3
    %p113 = pnand %p111, %p112
    %p114 = pneg %p113
    // Predicated region
    $region9: #{forward.1} parent=5 // pred_check
      _
    $region10: #{forward.1} parent=5 // pred_check_branch
      %116 = sbr.rel (%p113) target = $region12
    $region11: #{forward.1} parent=5 // pred_region
      %s117 = ssub.s32 %s9, 1
      // Predicated region
      $region13: #{forward.1} parent=11 // pred_check
        %p118 = pneg %p82
      $region14: #{forward.1} parent=11 // pred_check_branch
        %120 = sbr.rel (%p118) target = $region16
      $region15: #{forward.1} parent=11 // pred_region
        _
      $region16: #{forward.1} parent=11 // pred_fallthru
        _
    $region12: #{forward.1} parent=5 // pred_fallthru
      _
    %p121 = scmp.lt.s32.totalorder %s9, 2
    // Predicated region
    $region17: #{forward.1} parent=5 // pred_check
      %p122 = pneg %p121
    $region18: #{forward.1} parent=5 // pred_check_branch
      %124 = sbr.rel (%p122) target = $region20
    $region19: #{forward.1} parent=5 // pred_region
      // Predicated region
      $region21: #{forward.1} parent=19 // pred_check
        %p125 = pneg %p29
      $region22: #{forward.1} parent=19 // pred_check_branch
        %127 = sbr.rel (%p125) target = $region24
      $region23: #{forward.1} parent=19 // pred_region
        %s128 = smul.u32 24, %s9
        %p129 = scmp.lt.s32.totalorder %s128, 47
        %s130 = scalar_select %p129, %s128, 47
        %s131 = scalar_lea.vmem %s0, %s130
        %s132 = smul.u32 24, %s9
      $region24: #{forward.1} parent=19 // pred_fallthru
        _
      // Predicated region
      $region25: #{forward.1} parent=19 // pred_check
        %p133 = pneg %p55
      $region26: #{forward.1} parent=19 // pred_check_branch
        %135 = sbr.rel (%p133) target = $region28
      $region27: #{forward.1} parent=19 // pred_region
        %s136 = smul.u32 24, %s9
        %p137 = scmp.lt.s32.totalorder %s136, 47
        %s138 = scalar_select %p137, %s136, 47
        %s139 = smul.addr %s138, 2
        %s140 = scalar_lea.vmem %s1, %s139
        %s141 = smul.u32 24, %s9
      $region28: #{forward.1} parent=19 // pred_fallthru
        _
    $region20: #{forward.1} parent=5 // pred_fallthru
      _
    %p142 = scmp.le.s32.totalorder 1, %s9
    %p143 = scmp.lt.s32.totalorder %s9, 3
    %p144 = pnand %p142, %p143
    %p145 = pneg %p144
    // Predicated region
    $region29: #{forward.1} parent=5 // pred_check
      _
    $region30: #{forward.1} parent=5 // pred_check_branch
      %147 = sbr.rel (%p144) target = $region32
    $region31: #{forward.1} parent=5 // pred_region
      %s148 = ssub.s32 %s9, 1
      %s149 = smul.u32 24, %s14
      %p150 = scmp.lt.s32.totalorder %s149, 47
      %s151 = scalar_select %p150, %s149, 47
      %s152 = scalar_lea.vmem %s0, %s151
      %p153 = pneg %p35
      %p154 = pneg %p32
      %s155 = smul.u32 24, %s14
      %p156 = scmp.lt.s32.totalorder %s155, 47
      %s157 = scalar_select %p156, %s155, 47
      %s158 = smul.addr %s157, 2
      %s159 = scalar_lea.vmem %s1, %s158
      %p160 = pneg %p61
      %p161 = pneg %p58
      %p162 = pneg %p82
      %p163 = pneg %p79
      %p164 = pneg %p103
      %p165 = pneg %p100
      %s166 = smul.u32 24, %s14
      %p167 = scmp.lt.s32.totalorder %s166, 47
      %s168 = scalar_select %p167, %s166, 47
      %s169 = scalar_lea.vmem %s0, %s168
      %s170 = smul.u32 24, %s14
      %s171 = smul.u32 24, %s14
      %p172 = scmp.lt.s32.totalorder %s171, 47
      %s173 = scalar_select %p172, %s171, 47
      %s174 = smul.addr %s173, 2
      %s175 = scalar_lea.vmem %s1, %s174
      %s176 = smul.u32 24, %s14
      %p178 = scmp.eq.s32.totalorder %s14, 0
      // Predicated region
      $region33: #{forward.1} parent=31 // pred_check
        %p179 = pneg %p178
      $region34: #{forward.1} parent=31 // pred_check_branch
        %181 = sbr.rel (%p179) target = $region36
      $region35: #{forward.1} parent=31 // pred_region
        %vm182 = vcmask 17408
        %183 = vst.msk [vmem:[#allocation2] sm:$0x3] %vm182, 0.0
      $region36: #{forward.1} parent=31 // pred_fallthru
        _
      %v184 = vld [vmem:[#allocation2] sm:$0x3]
      %v185 = vld [vmem:[%s169] sm:$0xff]
      %v186 = vld [vmem:[%s169 + $0x8] sm:$0xff]
      %v187 = vld [vmem:[%s169 + $0x10] sm:$0xff]
      %v188 = vld [vmem:[%s175] sm:$0xff]
      %v189 = vld [vmem:[%s175 + $0x8] sm:$0xff]
      %v190 = vld [vmem:[%s175 + $0x10] sm:$0xff]
      %v191 = vld [vmem:[%s175 + $0x18] sm:$0xff]
      %v192 = vld [vmem:[%s175 + $0x20] sm:$0xff]
      %v193 = vld [vmem:[%s175 + $0x28] sm:$0xff]
      %v197 = vcombine.high %v185, %v185
      %v199 = vunpack.c.l.s4 1966171168
      %v200 = vunpack.c.0.s8 %v199
      %v201 = vlaneseq
      %v202 = vshrl.u32 %v201, 7
      %v203 = vsub.s32 %v200, %v202
      %v204 = vrot.slane %v185, %v203
      %v206 = vunpack.c.l.s4 1966171168
      %v207 = vunpack.c.0.s8 %v206
      %v208 = vlaneseq
      %v209 = vshrl.u32 %v208, 7
      %v210 = vsub.s32 %v207, %v209
      %v211 = vrot.slane %v197, %v210
      %v212 = vcombine.high %v204, %v204
      %v213 = vcombine.high %v211, %v211
      %v215 = vunpack.c.l.s4 1966171168
      %v216 = vunpack.c.0.s8 %v215
      %v217 = vlaneseq
      %v218 = vshrl.u32 %v217, 7
      %v219 = vsub.s32 %v216, %v218
      %v220 = vrot.slane %v204, %v219
      %v222 = vunpack.c.l.s4 1966171168
      %v223 = vunpack.c.0.s8 %v222
      %v224 = vlaneseq
      %v225 = vshrl.u32 %v224, 7
      %v226 = vsub.s32 %v223, %v225
      %v227 = vrot.slane %v211, %v226
      %v229 = vunpack.c.l.s4 1966171168
      %v230 = vunpack.c.0.s8 %v229
      %v231 = vlaneseq
      %v232 = vshrl.u32 %v231, 7
      %v233 = vsub.s32 %v230, %v232
      %v234 = vrot.slane %v212, %v233
      %v236 = vunpack.c.l.s4 1966171168
      %v237 = vunpack.c.0.s8 %v236
      %v238 = vlaneseq
      %v239 = vshrl.u32 %v238, 7
      %v240 = vsub.s32 %v237, %v239
      %v241 = vrot.slane %v213, %v240
      %v242 = vcombine.high %v220, %v220
      %v243 = vcombine.high %v227, %v227
      %v244 = vcombine.high %v234, %v234
      %v245 = vcombine.high %v241, %v241
      %v246 = vcombine.high %v186, %v186
      %v248 = vunpack.c.l.s4 1966171168
      %v249 = vunpack.c.0.s8 %v248
      %v250 = vlaneseq
      %v251 = vshrl.u32 %v250, 7
      %v252 = vsub.s32 %v249, %v251
      %v253 = vrot.slane %v186, %v252
      %v255 = vunpack.c.l.s4 1966171168
      %v256 = vunpack.c.0.s8 %v255
      %v257 = vlaneseq
      %v258 = vshrl.u32 %v257, 7
      %v259 = vsub.s32 %v256, %v258
      %v260 = vrot.slane %v246, %v259
      %v261 = vcombine.high %v253, %v253
      %v262 = vcombine.high %v260, %v260
      %v264 = vunpack.c.l.s4 1966171168
      %v265 = vunpack.c.0.s8 %v264
      %v266 = vlaneseq
      %v267 = vshrl.u32 %v266, 7
      %v268 = vsub.s32 %v265, %v267
      %v269 = vrot.slane %v253, %v268
      %v271 = vunpack.c.l.s4 1966171168
      %v272 = vunpack.c.0.s8 %v271
      %v273 = vlaneseq
      %v274 = vshrl.u32 %v273, 7
      %v275 = vsub.s32 %v272, %v274
      %v276 = vrot.slane %v260, %v275
      %v278 = vunpack.c.l.s4 1966171168
      %v279 = vunpack.c.0.s8 %v278
      %v280 = vlaneseq
      %v281 = vshrl.u32 %v280, 7
      %v282 = vsub.s32 %v279, %v281
      %v283 = vrot.slane %v261, %v282
      %v285 = vunpack.c.l.s4 1966171168
      %v286 = vunpack.c.0.s8 %v285
      %v287 = vlaneseq
      %v288 = vshrl.u32 %v287, 7
      %v289 = vsub.s32 %v286, %v288
      %v290 = vrot.slane %v262, %v289
      %v291 = vcombine.high %v269, %v269
      %v292 = vcombine.high %v276, %v276
      %v293 = vcombine.high %v283, %v283
      %v294 = vcombine.high %v290, %v290
      %v295 = vcombine.high %v187, %v187
      %v297 = vunpack.c.l.s4 1966171168
      %v298 = vunpack.c.0.s8 %v297
      %v299 = vlaneseq
      %v300 = vshrl.u32 %v299, 7
      %v301 = vsub.s32 %v298, %v300
      %v302 = vrot.slane %v187, %v301
      %v304 = vunpack.c.l.s4 1966171168
      %v305 = vunpack.c.0.s8 %v304
      %v306 = vlaneseq
      %v307 = vshrl.u32 %v306, 7
      %v308 = vsub.s32 %v305, %v307
      %v309 = vrot.slane %v295, %v308
      %v310 = vcombine.high %v302, %v302
      %v311 = vcombine.high %v309, %v309
      %v313 = vunpack.c.l.s4 1966171168
      %v314 = vunpack.c.0.s8 %v313
      %v315 = vlaneseq
      %v316 = vshrl.u32 %v315, 7
      %v317 = vsub.s32 %v314, %v316
      %v318 = vrot.slane %v302, %v317
      %v320 = vunpack.c.l.s4 1966171168
      %v321 = vunpack.c.0.s8 %v320
      %v322 = vlaneseq
      %v323 = vshrl.u32 %v322, 7
      %v324 = vsub.s32 %v321, %v323
      %v325 = vrot.slane %v309, %v324
      %v327 = vunpack.c.l.s4 1966171168
      %v328 = vunpack.c.0.s8 %v327
      %v329 = vlaneseq
      %v330 = vshrl.u32 %v329, 7
      %v331 = vsub.s32 %v328, %v330
      %v332 = vrot.slane %v310, %v331
      %v334 = vunpack.c.l.s4 1966171168
      %v335 = vunpack.c.0.s8 %v334
      %v336 = vlaneseq
      %v337 = vshrl.u32 %v336, 7
      %v338 = vsub.s32 %v335, %v337
      %v339 = vrot.slane %v311, %v338
      %v340 = vcombine.high %v318, %v318
      %v341 = vcombine.high %v325, %v325
      %v342 = vcombine.high %v332, %v332
      %v343 = vcombine.high %v339, %v339
      %v374 = vcombine.high %v188, %v188
      %v376 = vunpack.c.l.s4 1983009808
      %v377 = vunpack.c.0.s8 %v376
      %v378 = vlaneseq
      %v379 = vshrl.u32 %v378, 7
      %v380 = vsub.s32 %v377, %v379
      %v381 = vrot.slane %v188, %v380
      %v383 = vunpack.c.l.s4 1983009808
      %v384 = vunpack.c.0.s8 %v383
      %v385 = vlaneseq
      %v386 = vshrl.u32 %v385, 7
      %v387 = vsub.s32 %v384, %v386
      %v388 = vrot.slane %v374, %v387
      %v389 = vcombine.high %v381, %v381
      %v390 = vcombine.high %v388, %v388
      %v391 = vcombine.high %v189, %v189
      %v393 = vunpack.c.l.s4 1983009808
      %v394 = vunpack.c.0.s8 %v393
      %v395 = vlaneseq
      %v396 = vshrl.u32 %v395, 7
      %v397 = vsub.s32 %v394, %v396
      %v398 = vrot.slane %v189, %v397
      %v400 = vunpack.c.l.s4 1983009808
      %v401 = vunpack.c.0.s8 %v400
      %v402 = vlaneseq
      %v403 = vshrl.u32 %v402, 7
      %v404 = vsub.s32 %v401, %v403
      %v405 = vrot.slane %v391, %v404
      %v406 = vcombine.high %v398, %v398
      %v407 = vcombine.high %v405, %v405
      %v408 = vcombine.high %v190, %v190
      %v410 = vunpack.c.l.s4 1983009808
      %v411 = vunpack.c.0.s8 %v410
      %v412 = vlaneseq
      %v413 = vshrl.u32 %v412, 7
      %v414 = vsub.s32 %v411, %v413
      %v415 = vrot.slane %v190, %v414
      %v417 = vunpack.c.l.s4 1983009808
      %v418 = vunpack.c.0.s8 %v417
      %v419 = vlaneseq
      %v420 = vshrl.u32 %v419, 7
      %v421 = vsub.s32 %v418, %v420
      %v422 = vrot.slane %v408, %v421
      %v423 = vcombine.high %v415, %v415
      %v424 = vcombine.high %v422, %v422
      %v425 = vcombine.high %v191, %v191
      %v427 = vunpack.c.l.s4 1983009808
      %v428 = vunpack.c.0.s8 %v427
      %v429 = vlaneseq
      %v430 = vshrl.u32 %v429, 7
      %v431 = vsub.s32 %v428, %v430
      %v432 = vrot.slane %v191, %v431
      %v434 = vunpack.c.l.s4 1983009808
      %v435 = vunpack.c.0.s8 %v434
      %v436 = vlaneseq
      %v437 = vshrl.u32 %v436, 7
      %v438 = vsub.s32 %v435, %v437
      %v439 = vrot.slane %v425, %v438
      %v440 = vcombine.high %v432, %v432
      %v441 = vcombine.high %v439, %v439
      %v442 = vcombine.high %v192, %v192
      %v444 = vunpack.c.l.s4 1983009808
      %v445 = vunpack.c.0.s8 %v444
      %v446 = vlaneseq
      %v447 = vshrl.u32 %v446, 7
      %v448 = vsub.s32 %v445, %v447
      %v449 = vrot.slane %v192, %v448
      %v451 = vunpack.c.l.s4 1983009808
      %v452 = vunpack.c.0.s8 %v451
      %v453 = vlaneseq
      %v454 = vshrl.u32 %v453, 7
      %v455 = vsub.s32 %v452, %v454
      %v456 = vrot.slane %v442, %v455
      %v457 = vcombine.high %v449, %v449
      %v458 = vcombine.high %v456, %v456
      %v459 = vcombine.high %v193, %v193
      %v461 = vunpack.c.l.s4 1983009808
      %v462 = vunpack.c.0.s8 %v461
      %v463 = vlaneseq
      %v464 = vshrl.u32 %v463, 7
      %v465 = vsub.s32 %v462, %v464
      %v466 = vrot.slane %v193, %v465
      %v468 = vunpack.c.l.s4 1983009808
      %v469 = vunpack.c.0.s8 %v468
      %v470 = vlaneseq
      %v471 = vshrl.u32 %v470, 7
      %v472 = vsub.s32 %v469, %v471
      %v473 = vrot.slane %v459, %v472
      %v474 = vcombine.high %v466, %v466
      %v475 = vcombine.high %v473, %v473
      %500 = vmatprep.subr.bf16.mxu0 %v389
      %501 = vmatpush1.bf16.xpose.msra.mxu0 %v381
      %502 = vmatprep.subr.bf16.mxu0 0
      %503 = vmatpush1.bf16.xpose.msra.mxu0 0
      %504 = vmatprep.subr.bf16.mxu0 0
      %505 = vmatpush1.bf16.xpose.msra.mxu0 0
      %506 = vmatprep.subr.bf16.mxu0 0
      %507 = vmatpush1.bf16.xpose.msra.mxu0 0
      %508 = vmatprep.subr.bf16.mxu0 0
      %509 = vmatpush1.bf16.xpose.msra.mxu0 0
      %510 = vmatprep.subr.bf16.mxu0 0
      %511 = vmatpush1.bf16.xpose.msra.mxu0 0
      %512 = vmatprep.subr.bf16.mxu0 0
      %513 = vmatpush1.bf16.xpose.msra.mxu0 0
      %514 = vmatprep.subr.bf16.mxu0 0
      %515 = vmatpush1.bf16.xpose.msra.mxu0 0
      %516 = vmatprep.subr.bf16.mxu0 0
      %517 = vmatpush1.bf16.xpose.msra.mxu0 0
      %518 = vmatprep.subr.bf16.mxu0 0
      %519 = vmatpush1.bf16.xpose.msra.mxu0 0
      %520 = vmatprep.subr.bf16.mxu0 0
      %521 = vmatpush1.bf16.xpose.msra.mxu0 0
      %522 = vmatprep.subr.bf16.mxu0 0
      %523 = vmatpush1.bf16.xpose.msra.mxu0 0
      %524 = vmatprep.subr.bf16.mxu0 0
      %525 = vmatpush1.bf16.xpose.msra.mxu0 0
      %526 = vmatprep.subr.bf16.mxu0 0
      %527 = vmatpush1.bf16.xpose.msra.mxu0 0
      %528 = vmatprep.subr.bf16.mxu0 0
      %529 = vmatpush1.bf16.xpose.msra.mxu0 0
      %530 = vmatprep.subr.bf16.mxu0 0
      %531 = vmatpush1.bf16.xpose.msra.mxu0 0
      %532 = vmatprep.mubr.bf16.mxu0 %v234
      %533 = vmatmul.mubr.bf16.gmra.mrb[0].mxu0 %v220
      %v534 = vpop.f32.mrb[0].mxu0
      %v535 = vadd.f32 0.0, %v534
      %v536 = vpop.f32.mrb[0].mxu0
      %v537 = vpop.f32.mrb[0].mxu0
      %v538 = vpop.f32.mrb[0].mxu0
      %539 = vdwg.mxu0
      %540 = vmatprep.subr.bf16.mxu0 %v390
      %541 = vmatpush1.bf16.xpose.msra.mxu0 %v388
      %542 = vmatprep.subr.bf16.mxu0 0
      %543 = vmatpush1.bf16.xpose.msra.mxu0 0
      %544 = vmatprep.subr.bf16.mxu0 0
      %545 = vmatpush1.bf16.xpose.msra.mxu0 0
      %546 = vmatprep.subr.bf16.mxu0 0
      %547 = vmatpush1.bf16.xpose.msra.mxu0 0
      %548 = vmatprep.subr.bf16.mxu0 0
      %549 = vmatpush1.bf16.xpose.msra.mxu0 0
      %550 = vmatprep.subr.bf16.mxu0 0
      %551 = vmatpush1.bf16.xpose.msra.mxu0 0
      %552 = vmatprep.subr.bf16.mxu0 0
      %553 = vmatpush1.bf16.xpose.msra.mxu0 0
      %554 = vmatprep.subr.bf16.mxu0 0
      %555 = vmatpush1.bf16.xpose.msra.mxu0 0
      %556 = vmatprep.subr.bf16.mxu0 0
      %557 = vmatpush1.bf16.xpose.msra.mxu0 0
      %558 = vmatprep.subr.bf16.mxu0 0
      %559 = vmatpush1.bf16.xpose.msra.mxu0 0
      %560 = vmatprep.subr.bf16.mxu0 0
      %561 = vmatpush1.bf16.xpose.msra.mxu0 0
      %562 = vmatprep.subr.bf16.mxu0 0
      %563 = vmatpush1.bf16.xpose.msra.mxu0 0
      %564 = vmatprep.subr.bf16.mxu0 0
      %565 = vmatpush1.bf16.xpose.msra.mxu0 0
      %566 = vmatprep.subr.bf16.mxu0 0
      %567 = vmatpush1.bf16.xpose.msra.mxu0 0
      %568 = vmatprep.subr.bf16.mxu0 0
      %569 = vmatpush1.bf16.xpose.msra.mxu0 0
      %570 = vmatprep.subr.bf16.mxu0 0
      %571 = vmatpush1.bf16.xpose.msra.mxu0 0
      %572 = vmatprep.mubr.bf16.mxu0 %v244
      %573 = vmatmul.mubr.bf16.gmra.mrb[0].mxu0 %v242
      %v574 = vpop.f32.mrb[0].mxu0
      %v575 = vadd.f32 %v535, %v574
      %v576 = vpop.f32.mrb[0].mxu0
      %v577 = vpop.f32.mrb[0].mxu0
      %v578 = vpop.f32.mrb[0].mxu0
      %579 = vdwg.mxu0
      %580 = vmatprep.subr.bf16.mxu0 %v406
      %581 = vmatpush1.bf16.xpose.msra.mxu0 %v398
      %582 = vmatprep.subr.bf16.mxu0 0
      %583 = vmatpush1.bf16.xpose.msra.mxu0 0
      %584 = vmatprep.subr.bf16.mxu0 0
      %585 = vmatpush1.bf16.xpose.msra.mxu0 0
      %586 = vmatprep.subr.bf16.mxu0 0
      %587 = vmatpush1.bf16.xpose.msra.mxu0 0
      %588 = vmatprep.subr.bf16.mxu0 0
      %589 = vmatpush1.bf16.xpose.msra.mxu0 0
      %590 = vmatprep.subr.bf16.mxu0 0
      %591 = vmatpush1.bf16.xpose.msra.mxu0 0
      %592 = vmatprep.subr.bf16.mxu0 0
      %593 = vmatpush1.bf16.xpose.msra.mxu0 0
      %594 = vmatprep.subr.bf16.mxu0 0
      %595 = vmatpush1.bf16.xpose.msra.mxu0 0
      %596 = vmatprep.subr.bf16.mxu0 0
      %597 = vmatpush1.bf16.xpose.msra.mxu0 0
      %598 = vmatprep.subr.bf16.mxu0 0
      %599 = vmatpush1.bf16.xpose.msra.mxu0 0
      %600 = vmatprep.subr.bf16.mxu0 0
      %601 = vmatpush1.bf16.xpose.msra.mxu0 0
      %602 = vmatprep.subr.bf16.mxu0 0
      %603 = vmatpush1.bf16.xpose.msra.mxu0 0
      %604 = vmatprep.subr.bf16.mxu0 0
      %605 = vmatpush1.bf16.xpose.msra.mxu0 0
      %606 = vmatprep.subr.bf16.mxu0 0
      %607 = vmatpush1.bf16.xpose.msra.mxu0 0
      %608 = vmatprep.subr.bf16.mxu0 0
      %609 = vmatpush1.bf16.xpose.msra.mxu0 0
      %610 = vmatprep.subr.bf16.mxu0 0
      %611 = vmatpush1.bf16.xpose.msra.mxu0 0
      %612 = vmatprep.mubr.bf16.mxu0 %v241
      %613 = vmatmul.mubr.bf16.gmra.mrb[0].mxu0 %v227
      %v614 = vpop.f32.mrb[0].mxu0
      %v615 = vadd.f32 %v575, %v614
      %v616 = vpop.f32.mrb[0].mxu0
      %v617 = vpop.f32.mrb[0].mxu0
      %v618 = vpop.f32.mrb[0].mxu0
      %619 = vdwg.mxu0
      %620 = vmatprep.subr.bf16.mxu0 %v407
      %621 = vmatpush1.bf16.xpose.msra.mxu0 %v405
      %622 = vmatprep.subr.bf16.mxu0 0
      %623 = vmatpush1.bf16.xpose.msra.mxu0 0
      %624 = vmatprep.subr.bf16.mxu0 0
      %625 = vmatpush1.bf16.xpose.msra.mxu0 0
      %626 = vmatprep.subr.bf16.mxu0 0
      %627 = vmatpush1.bf16.xpose.msra.mxu0 0
      %628 = vmatprep.subr.bf16.mxu0 0
      %629 = vmatpush1.bf16.xpose.msra.mxu0 0
      %630 = vmatprep.subr.bf16.mxu0 0
      %631 = vmatpush1.bf16.xpose.msra.mxu0 0
      %632 = vmatprep.subr.bf16.mxu0 0
      %633 = vmatpush1.bf16.xpose.msra.mxu0 0
      %634 = vmatprep.subr.bf16.mxu0 0
      %635 = vmatpush1.bf16.xpose.msra.mxu0 0
      %636 = vmatprep.subr.bf16.mxu0 0
      %637 = vmatpush1.bf16.xpose.msra.mxu0 0
      %638 = vmatprep.subr.bf16.mxu0 0
      %639 = vmatpush1.bf16.xpose.msra.mxu0 0
      %640 = vmatprep.subr.bf16.mxu0 0
      %641 = vmatpush1.bf16.xpose.msra.mxu0 0
      %642 = vmatprep.subr.bf16.mxu0 0
      %643 = vmatpush1.bf16.xpose.msra.mxu0 0
      %644 = vmatprep.subr.bf16.mxu0 0
      %645 = vmatpush1.bf16.xpose.msra.mxu0 0
      %646 = vmatprep.subr.bf16.mxu0 0
      %647 = vmatpush1.bf16.xpose.msra.mxu0 0
      %648 = vmatprep.subr.bf16.mxu0 0
      %649 = vmatpush1.bf16.xpose.msra.mxu0 0
      %650 = vmatprep.subr.bf16.mxu0 0
      %651 = vmatpush1.bf16.xpose.msra.mxu0 0
      %652 = vmatprep.mubr.bf16.mxu0 %v245
      %653 = vmatmul.mubr.bf16.gmra.mrb[0].mxu0 %v243
      %v654 = vpop.f32.mrb[0].mxu0
      %v655 = vadd.f32 %v615, %v654
      %v656 = vpop.f32.mrb[0].mxu0
      %v657 = vpop.f32.mrb[0].mxu0
      %v658 = vpop.f32.mrb[0].mxu0
      %659 = vdwg.mxu0
      %660 = vmatprep.subr.bf16.mxu0 %v423
      %661 = vmatpush1.bf16.xpose.msra.mxu0 %v415
      %662 = vmatprep.subr.bf16.mxu0 0
      %663 = vmatpush1.bf16.xpose.msra.mxu0 0
      %664 = vmatprep.subr.bf16.mxu0 0
      %665 = vmatpush1.bf16.xpose.msra.mxu0 0
      %666 = vmatprep.subr.bf16.mxu0 0
      %667 = vmatpush1.bf16.xpose.msra.mxu0 0
      %668 = vmatprep.subr.bf16.mxu0 0
      %669 = vmatpush1.bf16.xpose.msra.mxu0 0
      %670 = vmatprep.subr.bf16.mxu0 0
      %671 = vmatpush1.bf16.xpose.msra.mxu0 0
      %672 = vmatprep.subr.bf16.mxu0 0
      %673 = vmatpush1.bf16.xpose.msra.mxu0 0
      %674 = vmatprep.subr.bf16.mxu0 0
      %675 = vmatpush1.bf16.xpose.msra.mxu0 0
      %676 = vmatprep.subr.bf16.mxu0 0
      %677 = vmatpush1.bf16.xpose.msra.mxu0 0
      %678 = vmatprep.subr.bf16.mxu0 0
      %679 = vmatpush1.bf16.xpose.msra.mxu0 0
      %680 = vmatprep.subr.bf16.mxu0 0
      %681 = vmatpush1.bf16.xpose.msra.mxu0 0
      %682 = vmatprep.subr.bf16.mxu0 0
      %683 = vmatpush1.bf16.xpose.msra.mxu0 0
      %684 = vmatprep.subr.bf16.mxu0 0
      %685 = vmatpush1.bf16.xpose.msra.mxu0 0
      %686 = vmatprep.subr.bf16.mxu0 0
      %687 = vmatpush1.bf16.xpose.msra.mxu0 0
      %688 = vmatprep.subr.bf16.mxu0 0
      %689 = vmatpush1.bf16.xpose.msra.mxu0 0
      %690 = vmatprep.subr.bf16.mxu0 0
      %691 = vmatpush1.bf16.xpose.msra.mxu0 0
      %692 = vmatprep.mubr.bf16.mxu0 %v283
      %693 = vmatmul.mubr.bf16.gmra.mrb[0].mxu0 %v269
      %v694 = vpop.f32.mrb[0].mxu0
      %v695 = vadd.f32 %v655, %v694
      %v696 = vpop.f32.mrb[0].mxu0
      %v697 = vpop.f32.mrb[0].mxu0
      %v698 = vpop.f32.mrb[0].mxu0
      %699 = vdwg.mxu0
      %700 = vmatprep.subr.bf16.mxu0 %v424
      %701 = vmatpush1.bf16.xpose.msra.mxu0 %v422
      %702 = vmatprep.subr.bf16.mxu0 0
      %703 = vmatpush1.bf16.xpose.msra.mxu0 0
      %704 = vmatprep.subr.bf16.mxu0 0
      %705 = vmatpush1.bf16.xpose.msra.mxu0 0
      %706 = vmatprep.subr.bf16.mxu0 0
      %707 = vmatpush1.bf16.xpose.msra.mxu0 0
      %708 = vmatprep.subr.bf16.mxu0 0
      %709 = vmatpush1.bf16.xpose.msra.mxu0 0
      %710 = vmatprep.subr.bf16.mxu0 0
      %711 = vmatpush1.bf16.xpose.msra.mxu0 0
      %712 = vmatprep.subr.bf16.mxu0 0
      %713 = vmatpush1.bf16.xpose.msra.mxu0 0
      %714 = vmatprep.subr.bf16.mxu0 0
      %715 = vmatpush1.bf16.xpose.msra.mxu0 0
      %716 = vmatprep.subr.bf16.mxu0 0
      %717 = vmatpush1.bf16.xpose.msra.mxu0 0
      %718 = vmatprep.subr.bf16.mxu0 0
      %719 = vmatpush1.bf16.xpose.msra.mxu0 0
      %720 = vmatprep.subr.bf16.mxu0 0
      %721 = vmatpush1.bf16.xpose.msra.mxu0 0
      %722 = vmatprep.subr.bf16.mxu0 0
      %723 = vmatpush1.bf16.xpose.msra.mxu0 0
      %724 = vmatprep.subr.bf16.mxu0 0
      %725 = vmatpush1.bf16.xpose.msra.mxu0 0
      %726 = vmatprep.subr.bf16.mxu0 0
      %727 = vmatpush1.bf16.xpose.msra.mxu0 0
      %728 = vmatprep.subr.bf16.mxu0 0
      %729 = vmatpush1.bf16.xpose.msra.mxu0 0
      %730 = vmatprep.subr.bf16.mxu0 0
      %731 = vmatpush1.bf16.xpose.msra.mxu0 0
      %732 = vmatprep.mubr.bf16.mxu0 %v293
      %733 = vmatmul.mubr.bf16.gmra.mrb[0].mxu0 %v291
      %v734 = vpop.f32.mrb[0].mxu0
      %v735 = vadd.f32 %v695, %v734
      %v736 = vpop.f32.mrb[0].mxu0
      %v737 = vpop.f32.mrb[0].mxu0
      %v738 = vpop.f32.mrb[0].mxu0
      %739 = vdwg.mxu0
      %740 = vmatprep.subr.bf16.mxu0 %v440
      %741 = vmatpush1.bf16.xpose.msra.mxu0 %v432
      %742 = vmatprep.subr.bf16.mxu0 0
      %743 = vmatpush1.bf16.xpose.msra.mxu0 0
      %744 = vmatprep.subr.bf16.mxu0 0
      %745 = vmatpush1.bf16.xpose.msra.mxu0 0
      %746 = vmatprep.subr.bf16.mxu0 0
      %747 = vmatpush1.bf16.xpose.msra.mxu0 0
      %748 = vmatprep.subr.bf16.mxu0 0
      %749 = vmatpush1.bf16.xpose.msra.mxu0 0
      %750 = vmatprep.subr.bf16.mxu0 0
      %751 = vmatpush1.bf16.xpose.msra.mxu0 0
      %752 = vmatprep.subr.bf16.mxu0 0
      %753 = vmatpush1.bf16.xpose.msra.mxu0 0
      %754 = vmatprep.subr.bf16.mxu0 0
      %755 = vmatpush1.bf16.xpose.msra.mxu0 0
      %756 = vmatprep.subr.bf16.mxu0 0
      %757 = vmatpush1.bf16.xpose.msra.mxu0 0
      %758 = vmatprep.subr.bf16.mxu0 0
      %759 = vmatpush1.bf16.xpose.msra.mxu0 0
      %760 = vmatprep.subr.bf16.mxu0 0
      %761 = vmatpush1.bf16.xpose.msra.mxu0 0
      %762 = vmatprep.subr.bf16.mxu0 0
      %763 = vmatpush1.bf16.xpose.msra.mxu0 0
      %764 = vmatprep.subr.bf16.mxu0 0
      %765 = vmatpush1.bf16.xpose.msra.mxu0 0
      %766 = vmatprep.subr.bf16.mxu0 0
      %767 = vmatpush1.bf16.xpose.msra.mxu0 0
      %768 = vmatprep.subr.bf16.mxu0 0
      %769 = vmatpush1.bf16.xpose.msra.mxu0 0
      %770 = vmatprep.subr.bf16.mxu0 0
      %771 = vmatpush1.bf16.xpose.msra.mxu0 0
      %772 = vmatprep.mubr.bf16.mxu0 %v290
      %773 = vmatmul.mubr.bf16.gmra.mrb[0].mxu0 %v276
      %v774 = vpop.f32.mrb[0].mxu0
      %v775 = vadd.f32 %v735, %v774
      %v776 = vpop.f32.mrb[0].mxu0
      %v777 = vpop.f32.mrb[0].mxu0
      %v778 = vpop.f32.mrb[0].mxu0
      %779 = vdwg.mxu0
      %780 = vmatprep.subr.bf16.mxu0 %v441
      %781 = vmatpush1.bf16.xpose.msra.mxu0 %v439
      %782 = vmatprep.subr.bf16.mxu0 0
      %783 = vmatpush1.bf16.xpose.msra.mxu0 0
      %784 = vmatprep.subr.bf16.mxu0 0
      %785 = vmatpush1.bf16.xpose.msra.mxu0 0
      %786 = vmatprep.subr.bf16.mxu0 0
      %787 = vmatpush1.bf16.xpose.msra.mxu0 0
      %788 = vmatprep.subr.bf16.mxu0 0
      %789 = vmatpush1.bf16.xpose.msra.mxu0 0
      %790 = vmatprep.subr.bf16.mxu0 0
      %791 = vmatpush1.bf16.xpose.msra.mxu0 0
      %792 = vmatprep.subr.bf16.mxu0 0
      %793 = vmatpush1.bf16.xpose.msra.mxu0 0
      %794 = vmatprep.subr.bf16.mxu0 0
      %795 = vmatpush1.bf16.xpose.msra.mxu0 0
      %796 = vmatprep.subr.bf16.mxu0 0
      %797 = vmatpush1.bf16.xpose.msra.mxu0 0
      %798 = vmatprep.subr.bf16.mxu0 0
      %799 = vmatpush1.bf16.xpose.msra.mxu0 0
      %800 = vmatprep.subr.bf16.mxu0 0
      %801 = vmatpush1.bf16.xpose.msra.mxu0 0
      %802 = vmatprep.subr.bf16.mxu0 0
      %803 = vmatpush1.bf16.xpose.msra.mxu0 0
      %804 = vmatprep.subr.bf16.mxu0 0
      %805 = vmatpush1.bf16.xpose.msra.mxu0 0
      %806 = vmatprep.subr.bf16.mxu0 0
      %807 = vmatpush1.bf16.xpose.msra.mxu0 0
      %808 = vmatprep.subr.bf16.mxu0 0
      %809 = vmatpush1.bf16.xpose.msra.mxu0 0
      %810 = vmatprep.subr.bf16.mxu0 0
      %811 = vmatpush1.bf16.xpose.msra.mxu0 0
      %812 = vmatprep.mubr.bf16.mxu0 %v294
      %813 = vmatmul.mubr.bf16.gmra.mrb[0].mxu0 %v292
      %v814 = vpop.f32.mrb[0].mxu0
      %v815 = vadd.f32 %v775, %v814
      %v816 = vpop.f32.mrb[0].mxu0
      %v817 = vpop.f32.mrb[0].mxu0
      %v818 = vpop.f32.mrb[0].mxu0
      %819 = vdwg.mxu0
      %820 = vmatprep.subr.bf16.mxu0 %v457
      %821 = vmatpush1.bf16.xpose.msra.mxu0 %v449
      %822 = vmatprep.subr.bf16.mxu0 0
      %823 = vmatpush1.bf16.xpose.msra.mxu0 0
      %824 = vmatprep.subr.bf16.mxu0 0
      %825 = vmatpush1.bf16.xpose.msra.mxu0 0
      %826 = vmatprep.subr.bf16.mxu0 0
      %827 = vmatpush1.bf16.xpose.msra.mxu0 0
      %828 = vmatprep.subr.bf16.mxu0 0
      %829 = vmatpush1.bf16.xpose.msra.mxu0 0
      %830 = vmatprep.subr.bf16.mxu0 0
      %831 = vmatpush1.bf16.xpose.msra.mxu0 0
      %832 = vmatprep.subr.bf16.mxu0 0
      %833 = vmatpush1.bf16.xpose.msra.mxu0 0
      %834 = vmatprep.subr.bf16.mxu0 0
      %835 = vmatpush1.bf16.xpose.msra.mxu0 0
      %836 = vmatprep.subr.bf16.mxu0 0
      %837 = vmatpush1.bf16.xpose.msra.mxu0 0
      %838 = vmatprep.subr.bf16.mxu0 0
      %839 = vmatpush1.bf16.xpose.msra.mxu0 0
      %840 = vmatprep.subr.bf16.mxu0 0
      %841 = vmatpush1.bf16.xpose.msra.mxu0 0
      %842 = vmatprep.subr.bf16.mxu0 0
      %843 = vmatpush1.bf16.xpose.msra.mxu0 0
      %844 = vmatprep.subr.bf16.mxu0 0
      %845 = vmatpush1.bf16.xpose.msra.mxu0 0
      %846 = vmatprep.subr.bf16.mxu0 0
      %847 = vmatpush1.bf16.xpose.msra.mxu0 0
      %848 = vmatprep.subr.bf16.mxu0 0
      %849 = vmatpush1.bf16.xpose.msra.mxu0 0
      %850 = vmatprep.subr.bf16.mxu0 0
      %851 = vmatpush1.bf16.xpose.msra.mxu0 0
      %852 = vmatprep.mubr.bf16.mxu0 %v332
      %853 = vmatmul.mubr.bf16.gmra.mrb[0].mxu0 %v318
      %v854 = vpop.f32.mrb[0].mxu0
      %v855 = vadd.f32 %v815, %v854
      %v856 = vpop.f32.mrb[0].mxu0
      %v857 = vpop.f32.mrb[0].mxu0
      %v858 = vpop.f32.mrb[0].mxu0
      %859 = vdwg.mxu0
      %860 = vmatprep.subr.bf16.mxu0 %v458
      %861 = vmatpush1.bf16.xpose.msra.mxu0 %v456
      %862 = vmatprep.subr.bf16.mxu0 0
      %863 = vmatpush1.bf16.xpose.msra.mxu0 0
      %864 = vmatprep.subr.bf16.mxu0 0
      %865 = vmatpush1.bf16.xpose.msra.mxu0 0
      %866 = vmatprep.subr.bf16.mxu0 0
      %867 = vmatpush1.bf16.xpose.msra.mxu0 0
      %868 = vmatprep.subr.bf16.mxu0 0
      %869 = vmatpush1.bf16.xpose.msra.mxu0 0
      %870 = vmatprep.subr.bf16.mxu0 0
      %871 = vmatpush1.bf16.xpose.msra.mxu0 0
      %872 = vmatprep.subr.bf16.mxu0 0
      %873 = vmatpush1.bf16.xpose.msra.mxu0 0
      %874 = vmatprep.subr.bf16.mxu0 0
      %875 = vmatpush1.bf16.xpose.msra.mxu0 0
      %876 = vmatprep.subr.bf16.mxu0 0
      %877 = vmatpush1.bf16.xpose.msra.mxu0 0
      %878 = vmatprep.subr.bf16.mxu0 0
      %879 = vmatpush1.bf16.xpose.msra.mxu0 0
      %880 = vmatprep.subr.bf16.mxu0 0
      %881 = vmatpush1.bf16.xpose.msra.mxu0 0
      %882 = vmatprep.subr.bf16.mxu0 0
      %883 = vmatpush1.bf16.xpose.msra.mxu0 0
      %884 = vmatprep.subr.bf16.mxu0 0
      %885 = vmatpush1.bf16.xpose.msra.mxu0 0
      %886 = vmatprep.subr.bf16.mxu0 0
      %887 = vmatpush1.bf16.xpose.msra.mxu0 0
      %888 = vmatprep.subr.bf16.mxu0 0
      %889 = vmatpush1.bf16.xpose.msra.mxu0 0
      %890 = vmatprep.subr.bf16.mxu0 0
      %891 = vmatpush1.bf16.xpose.msra.mxu0 0
      %892 = vmatprep.mubr.bf16.mxu0 %v342
      %893 = vmatmul.mubr.bf16.gmra.mrb[0].mxu0 %v340
      %v894 = vpop.f32.mrb[0].mxu0
      %v895 = vadd.f32 %v855, %v894
      %v896 = vpop.f32.mrb[0].mxu0
      %v897 = vpop.f32.mrb[0].mxu0
      %v898 = vpop.f32.mrb[0].mxu0
      %899 = vdwg.mxu0
      %900 = vmatprep.subr.bf16.mxu0 %v474
      %901 = vmatpush1.bf16.xpose.msra.mxu0 %v466
      %902 = vmatprep.subr.bf16.mxu0 0
      %903 = vmatpush1.bf16.xpose.msra.mxu0 0
      %904 = vmatprep.subr.bf16.mxu0 0
      %905 = vmatpush1.bf16.xpose.msra.mxu0 0
      %906 = vmatprep.subr.bf16.mxu0 0
      %907 = vmatpush1.bf16.xpose.msra.mxu0 0
      %908 = vmatprep.subr.bf16.mxu0 0
      %909 = vmatpush1.bf16.xpose.msra.mxu0 0
      %910 = vmatprep.subr.bf16.mxu0 0
      %911 = vmatpush1.bf16.xpose.msra.mxu0 0
      %912 = vmatprep.subr.bf16.mxu0 0
      %913 = vmatpush1.bf16.xpose.msra.mxu0 0
      %914 = vmatprep.subr.bf16.mxu0 0
      %915 = vmatpush1.bf16.xpose.msra.mxu0 0
      %916 = vmatprep.subr.bf16.mxu0 0
      %917 = vmatpush1.bf16.xpose.msra.mxu0 0
      %918 = vmatprep.subr.bf16.mxu0 0
      %919 = vmatpush1.bf16.xpose.msra.mxu0 0
      %920 = vmatprep.subr.bf16.mxu0 0
      %921 = vmatpush1.bf16.xpose.msra.mxu0 0
      %922 = vmatprep.subr.bf16.mxu0 0
      %923 = vmatpush1.bf16.xpose.msra.mxu0 0
      %924 = vmatprep.subr.bf16.mxu0 0
      %925 = vmatpush1.bf16.xpose.msra.mxu0 0
      %926 = vmatprep.subr.bf16.mxu0 0
      %927 = vmatpush1.bf16.xpose.msra.mxu0 0
      %928 = vmatprep.subr.bf16.mxu0 0
      %929 = vmatpush1.bf16.xpose.msra.mxu0 0
      %930 = vmatprep.subr.bf16.mxu0 0
      %931 = vmatpush1.bf16.xpose.msra.mxu0 0
      %932 = vmatprep.mubr.bf16.mxu0 %v339
      %933 = vmatmul.mubr.bf16.gmra.mrb[0].mxu0 %v325
      %v934 = vpop.f32.mrb[0].mxu0
      %v935 = vadd.f32 %v895, %v934
      %v936 = vpop.f32.mrb[0].mxu0
      %v937 = vpop.f32.mrb[0].mxu0
      %v938 = vpop.f32.mrb[0].mxu0
      %939 = vdwg.mxu0
      %940 = vmatprep.subr.bf16.mxu0 %v475
      %941 = vmatpush1.bf16.xpose.msra.mxu0 %v473
      %942 = vmatprep.subr.bf16.mxu0 0
      %943 = vmatpush1.bf16.xpose.msra.mxu0 0
      %944 = vmatprep.subr.bf16.mxu0 0
      %945 = vmatpush1.bf16.xpose.msra.mxu0 0
      %946 = vmatprep.subr.bf16.mxu0 0
      %947 = vmatpush1.bf16.xpose.msra.mxu0 0
      %948 = vmatprep.subr.bf16.mxu0 0
      %949 = vmatpush1.bf16.xpose.msra.mxu0 0
      %950 = vmatprep.subr.bf16.mxu0 0
      %951 = vmatpush1.bf16.xpose.msra.mxu0 0
      %952 = vmatprep.subr.bf16.mxu0 0
      %953 = vmatpush1.bf16.xpose.msra.mxu0 0
      %954 = vmatprep.subr.bf16.mxu0 0
      %955 = vmatpush1.bf16.xpose.msra.mxu0 0
      %956 = vmatprep.subr.bf16.mxu0 0
      %957 = vmatpush1.bf16.xpose.msra.mxu0 0
      %958 = vmatprep.subr.bf16.mxu0 0
      %959 = vmatpush1.bf16.xpose.msra.mxu0 0
      %960 = vmatprep.subr.bf16.mxu0 0
      %961 = vmatpush1.bf16.xpose.msra.mxu0 0
      %962 = vmatprep.subr.bf16.mxu0 0
      %963 = vmatpush1.bf16.xpose.msra.mxu0 0
      %964 = vmatprep.subr.bf16.mxu0 0
      %965 = vmatpush1.bf16.xpose.msra.mxu0 0
      %966 = vmatprep.subr.bf16.mxu0 0
      %967 = vmatpush1.bf16.xpose.msra.mxu0 0
      %968 = vmatprep.subr.bf16.mxu0 0
      %969 = vmatpush1.bf16.xpose.msra.mxu0 0
      %970 = vmatprep.subr.bf16.mxu0 0
      %971 = vmatpush1.bf16.xpose.msra.mxu0 0
      %972 = vmatprep.mubr.bf16.mxu0 %v343
      %973 = vmatmul.mubr.bf16.gmra.mrb[0].mxu0 %v341
      %v974 = vpop.f32.mrb[0].mxu0
      %v975 = vadd.f32 %v935, %v974
      %v976 = vpop.f32.mrb[0].mxu0
      %v977 = vpop.f32.mrb[0].mxu0
      %v978 = vpop.f32.mrb[0].mxu0
      %979 = vdwg.mxu0
      %v980 = vadd.f32 %v184, %v975
      %vm981 = vcmask 17408
      %982 = vst.msk [vmem:[#allocation2] sm:$0x3] %vm981, %v980
      %p983 = scmp.eq.s32.totalorder %s14, 1
      // Predicated region
      $region37: #{forward.1} parent=31 // pred_check
        %p984 = pneg %p983
      $region38: #{forward.1} parent=31 // pred_check_branch
        %986 = sbr.rel (%p984) target = $region40
      $region39: #{forward.1} parent=31 // pred_region
        %v987 = vld [vmem:[#allocation2] sm:$0x3]
        %v988 = vld [vmem:[%s2] sm:$0x1]
        %v990 = vlaneseq
        %v991 = vshrl.u32 %v990, 7
        %v992 = vsub.s32 0, %v991
        %v993 = vrot.slane %v988, %v992
        %v995 = vadd.f32 %v987, %v993
        %996 = vst.msk [vmem:[%s3] sm:$0x3] %vm981, %v995
      $region40: #{forward.1} parent=31 // pred_fallthru
        _
      // Predicated region
      $region41: #{forward.1} parent=31 // pred_check
        %p997 = pneg %p100
      $region42: #{forward.1} parent=31 // pred_check_branch
        %999 = sbr.rel (%p997) target = $region44
      $region43: #{forward.1} parent=31 // pred_region
        _
      $region44: #{forward.1} parent=31 // pred_fallthru
        _
      // Predicated region
      $region45: #{forward.1} parent=31 // pred_check
        %p1000 = pneg %p100
      $region46: #{forward.1} parent=31 // pred_check_branch
        %1002 = sbr.rel (%p1000) target = $region48
      $region47: #{forward.1} parent=31 // pred_region
        _
      $region48: #{forward.1} parent=31 // pred_fallthru
        _
    $region32: #{forward.1} parent=5 // pred_fallthru
      _
    %p1003 = scmp.le.s32.totalorder 2, %s9
    // Predicated region
    $region49: #{forward.1} parent=5 // pred_check
      %p1004 = pneg %p1003
    $region50: #{forward.1} parent=5 // pred_check_branch
      %1006 = sbr.rel (%p1004) target = $region52
    $region51: #{forward.1} parent=5 // pred_region
      %s1007 = ssub.s32 %s9, 2
    $region52: #{forward.1} parent=5 // pred_fallthru
      _
  $region6: #{forward.1} parent=0 // loop_footer
    %s13 = sadd.s32 1, %s9
  $region7: #{forward.1} parent=0 // loop_footer_branch
    %8 = sbr.rel target = $region3
  $region8: #{forward.1} parent=0 // loop_exit
    _

</llo_original>
